<compile_context>
chip_gen: v7x
topology: tpu7x:2x2x1
jax: 0.10.0
libtpu: 0.0.40
codegen_flags: <defaults>
</compile_context>

<pallas_src>
import functools

import jax
import jax.numpy as jnp
from jax.experimental import pallas as pl
from jax.experimental.pallas import tpu as pltpu

BIT_WIDTH = 6
ACT_QMIN = float(-(2 ** (BIT_WIDTH - 1)))       # -32
ACT_QMAX = float(2 ** (BIT_WIDTH - 1) - 1)      #  31
WGT_QMAX = float(2 ** (BIT_WIDTH - 1) - 1)      #  31 (narrow range)
BN_EPS = 1e-5
LANE = 128
SUBLANE = 8


def _round_up(v, m):
    return -(-v // m) * m


# ---------------- the Pallas kernel ------------------------------------------

def mlp_kernel(scal_ref,                 # SMEM f32[6]: scalar constants
               x_ref,                    # [bb, D_in] f32 batch tile
               w1_ref,                   # [D_in, H1] bf16 (integer-valued)
               w2_ref,                   # [H1, H2]   bf16
               w3_ref,                   # [H2, CPAD] bf16 (lane-padded head)
               colv_ref,                 # [1, 2*H1+2*H2+CPAD] f32 packed cols
               out_ref,                  # [bb, CPAD] f32
               *, h1, h2, cpad):
    inv_s_in = scal_ref[0]
    a1 = scal_ref[1]          # 0.5*s_q1/s_a1       (poly coeff, act1 folded)
    b1 = scal_ref[2]          # 0.25*s_q1^2/s_a1
    a2 = scal_ref[3]
    b2 = scal_ref[4]
    out_scale = scal_ref[5]   # s_a2 * s_w3

    # Packed per-column vectors: [cs1 | cb1 | cs2 | cb2 | b3] (128-aligned).
    o = 0
    cs1 = colv_ref[:, o:o + h1]; o += h1
    cb1 = colv_ref[:, o:o + h1]; o += h1
    cs2 = colv_ref[:, o:o + h2]; o += h2
    cb2 = colv_ref[:, o:o + h2]; o += h2
    b3 = colv_ref[:, o:o + cpad]

    x = x_ref[...].astype(jnp.float32)

    # input_quant: integer quant domain (dequant scale folded into cs1).
    q0 = jnp.clip(jnp.round(x * inv_s_in), ACT_QMIN, ACT_QMAX)

    # fc1 (bias=False) + bn1 + bn1.quant: one fused scale/bias per column.
    acc = jnp.dot(q0.astype(jnp.bfloat16), w1_ref[...],
                  preferred_element_type=jnp.float32)
    q1 = jnp.clip(jnp.round(acc * cs1 + cb1), ACT_QMIN, ACT_QMAX)

    # poly_activation(0.5*x + 0.25*x^2) on the dequant value + act1 quant,
    # folded into two coefficients: q' = clip(round(q*(a1 + b1*q))).
    q2 = jnp.clip(jnp.round(q1 * (a1 + b1 * q1)), ACT_QMIN, ACT_QMAX)

    # fc2 (bias=False) + bn2 + bn2.quant
    acc = jnp.dot(q2.astype(jnp.bfloat16), w2_ref[...],
                  preferred_element_type=jnp.float32)
    q3 = jnp.clip(jnp.round(acc * cs2 + cb2), ACT_QMIN, ACT_QMAX)

    # poly + act2
    q4 = jnp.clip(jnp.round(q3 * (a2 + b2 * q3)), ACT_QMIN, ACT_QMAX)

    # fc3 (bias=True) -> .value ; output lane-padded to CPAD (>=128) columns.
    acc = jnp.dot(q4.astype(jnp.bfloat16), w3_ref[...],
                  preferred_element_type=jnp.float32)
    out_ref[...] = (acc * out_scale + b3).astype(out_ref.dtype)


# ---------------- parameter setup (runs once, off the hot path) --------------

def _int_quant_weight(w):
    """Per-tensor symmetric narrow-range 6-bit quantization -> (int values, scale)."""
    amax = jnp.max(jnp.abs(w))
    s = jnp.maximum(amax, 1e-8) / WGT_QMAX
    q = jnp.clip(jnp.round(w / s), -WGT_QMAX, WGT_QMAX)
    return q, s


def prepare_params(params, x_calib):
    """Fake-quant weights, fold BN + quant scales, calibrate activation scales."""
    f32 = jnp.float32
    qw1, s_w1 = _int_quant_weight(params["w1"].astype(f32))   # [H1, D_in]
    qw2, s_w2 = _int_quant_weight(params["w2"].astype(f32))   # [H2, H1]
    qw3, s_w3 = _int_quant_weight(params["w3"].astype(f32))   # [C,  H2]

    inv_std1 = jax.lax.rsqrt(params["var1"].astype(f32) + BN_EPS)
    bn1_s = params["g1"].astype(f32) * inv_std1
    bn1_b = params["beta1"].astype(f32) - params["mean1"].astype(f32) * bn1_s
    inv_std2 = jax.lax.rsqrt(params["var2"].astype(f32) + BN_EPS)
    bn2_s = params["g2"].astype(f32) * inv_std2
    bn2_b = params["beta2"].astype(f32) - params["mean2"].astype(f32) * bn2_s

    def act_scale(v):
        return jnp.maximum(jnp.max(jnp.abs(v)), 1e-8) / ACT_QMAX

    # One-shot per-tensor max-abs calibration of the activation quant scales.
    x = x_calib.astype(f32)
    s_in = act_scale(x)
    inv_in = 1.0 / s_in
    q0 = jnp.clip(jnp.round(x * inv_in), ACT_QMIN, ACT_QMAX)

    cs1 = (s_in * s_w1) * bn1_s
    h1a = (q0 @ qw1.T) * cs1 + bn1_b
    s_q1 = act_scale(h1a)
    inv_q1 = 1.0 / s_q1
    qa = jnp.clip(jnp.round(h1a * inv_q1), ACT_QMIN, ACT_QMAX)
    p1 = qa * (0.5 * s_q1 + (0.25 * s_q1 * s_q1) * qa)
    s_a1 = act_scale(p1)
    inv_a1 = 1.0 / s_a1
    qb = jnp.clip(jnp.round(p1 * inv_a1), ACT_QMIN, ACT_QMAX)

    cs2 = (s_a1 * s_w2) * bn2_s
    h2a = (qb @ qw2.T) * cs2 + bn2_b
    s_q2 = act_scale(h2a)
    inv_q2 = 1.0 / s_q2
    qc = jnp.clip(jnp.round(h2a * inv_q2), ACT_QMIN, ACT_QMAX)
    p2 = qc * (0.5 * s_q2 + (0.25 * s_q2 * s_q2) * qc)
    s_a2 = act_scale(p2)
    inv_a2 = 1.0 / s_a2

    # Fold the activation-quant reciprocal scales into the per-column
    # scale/bias and the poly coefficients (fewer VPU multiplies in-kernel).
    cs1p = cs1 * inv_q1
    cb1p = bn1_b * inv_q1
    a1p = (0.5 * s_q1) * inv_a1
    b1p = (0.25 * s_q1 * s_q1) * inv_a1
    cs2p = cs2 * inv_q2
    cb2p = bn2_b * inv_q2
    a2p = (0.5 * s_q2) * inv_a2
    b2p = (0.25 * s_q2 * s_q2) * inv_a2

    # Lane-pad the classifier head to a dense (>=128-wide) output.
    C, H2 = qw3.shape
    CPAD = max(LANE, _round_up(C, LANE))
    qw3t = jnp.zeros((H2, CPAD), f32).at[:, :C].set(qw3.T)
    b3 = jnp.zeros((CPAD,), f32).at[:C].set(params["b3"].astype(f32))

    # Single packed per-column slab: [cs1 | cb1 | cs2 | cb2 | b3].
    colvec = jnp.concatenate([cs1p, cb1p, cs2p, cb2p, b3]).reshape(1, -1)

    scalars = jnp.stack([inv_in, a1p, b1p, a2p, b2p, s_a2 * s_w3]).astype(f32)

    return {
        "scalars": scalars,
        "qw1t": qw1.T.astype(jnp.bfloat16),      # exact: integers |q| <= 31
        "qw2t": qw2.T.astype(jnp.bfloat16),
        "qw3t": qw3t.astype(jnp.bfloat16),
        "colvec": colvec.astype(f32),
    }


# ---------------- forward wrapper ---------------------------------------------

@functools.partial(jax.jit, static_argnames=("num_classes", "block_b"))
def quant_mlp_forward(x, prep, *, num_classes, block_b=512):
    B, D_in = x.shape
    H1 = prep["qw1t"].shape[1]
    H2 = prep["qw2t"].shape[1]
    CPAD = prep["qw3t"].shape[1]
    TOT = prep["colvec"].shape[1]

    # Effective batch tile: never bigger than the (sublane-rounded) batch, and
    # when the batch allows it keep >= 2 grid steps so the "parallel" batch
    # axis can shard across v7x's two TensorCores.
    bb = min(block_b, _round_up(B, SUBLANE))
    if B > SUBLANE:
        bb = min(bb, _round_up((B + 1) // 2, SUBLANE))
    bb = max(bb, SUBLANE)

    # Ragged final tile: OOB rows are row-local garbage, never written back,
    # and only the first B rows / num_classes columns are returned anyway.
    grid = (pl.cdiv(B, bb),)

    kernel = functools.partial(mlp_kernel, h1=H1, h2=H2, cpad=CPAD)

    out = pl.pallas_call(
        kernel,
        out_shape=jax.ShapeDtypeStruct((B, CPAD), jnp.float32),
        grid=grid,
        in_specs=[
            pl.BlockSpec(memory_space=pltpu.MemorySpace.SMEM),   # scalars
            pl.BlockSpec((bb, D_in), lambda i: (i, 0)),          # x batch tile
            pl.BlockSpec((D_in, H1), lambda i: (0, 0)),          # W1
            pl.BlockSpec((H1, H2), lambda i: (0, 0)),            # W2
            pl.BlockSpec((H2, CPAD), lambda i: (0, 0)),          # W3 (padded)
            pl.BlockSpec((1, TOT), lambda i: (0, 0)),            # packed cols
        ],
        out_specs=pl.BlockSpec((bb, CPAD), lambda i: (i, 0)),
        compiler_params=pltpu.CompilerParams(
            dimension_semantics=("parallel",)),
    )(prep["scalars"], x.astype(jnp.float32),
      prep["qw1t"], prep["qw2t"], prep["qw3t"], prep["colvec"])

    return out[:, :num_classes]


# ---------------- pure-JAX reference (same folded quantized semantics) -------

def _reference(x, prep, num_classes):
    sc = prep["scalars"]
    inv_in, a1, b1, a2, b2, out_s = sc[0], sc[1], sc[2], sc[3], sc[4], sc[5]
    H1 = prep["qw1t"].shape[1]
    H2 = prep["qw2t"].shape[1]
    CPAD = prep["qw3t"].shape[1]
    colv = prep["colvec"][0]
    o = 0
    cs1 = colv[o:o + H1]; o += H1
    cb1 = colv[o:o + H1]; o += H1
    cs2 = colv[o:o + H2]; o += H2
    cb2 = colv[o:o + H2]; o += H2
    b3 = colv[o:o + CPAD]

    w1 = prep["qw1t"].astype(jnp.float32)
    w2 = prep["qw2t"].astype(jnp.float32)
    w3 = prep["qw3t"].astype(jnp.float32)

    x = x.astype(jnp.float32)
    q0 = jnp.clip(jnp.round(x * inv_in), ACT_QMIN, ACT_QMAX)
    q1 = jnp.clip(jnp.round((q0 @ w1) * cs1 + cb1), ACT_QMIN, ACT_QMAX)
    q2 = jnp.clip(jnp.round(q1 * (a1 + b1 * q1)), ACT_QMIN, ACT_QMAX)
    q3 = jnp.clip(jnp.round((q2 @ w2) * cs2 + cb2), ACT_QMIN, ACT_QMAX)
    q4 = jnp.clip(jnp.round(q3 * (a2 + b2 * q3)), ACT_QMIN, ACT_QMAX)
    out = (q4 @ w3) * out_s + b3
    return out[:, :num_classes]


# ---------------- main --------------------------------------------------------

if __name__ == "__main__":
    key = jax.random.PRNGKey(0)
    B, D_in, C = 8, 32, 10
    H1, H2 = 256, 128

    ks = jax.random.split(key, 14)
    x = jax.random.normal(ks[0], (B, D_in), jnp.float32)

    params = {
        # torch.nn.Linear weights are [out_features, in_features]
        "w1": jax.random.normal(ks[1], (H1, D_in), jnp.float32) / jnp.sqrt(D_in),
        "w2": jax.random.normal(ks[2], (H2, H1), jnp.float32) / jnp.sqrt(H1),
        "w3": jax.random.normal(ks[3], (C, H2), jnp.float32) / jnp.sqrt(H2),
        "b3": 0.1 * jax.random.normal(ks[4], (C,), jnp.float32),
        # BatchNorm1d(256): affine params + running stats (eval-mode semantics)
        "g1": 1.0 + 0.1 * jax.random.normal(ks[5], (H1,), jnp.float32),
        "beta1": 0.1 * jax.random.normal(ks[6], (H1,), jnp.float32),
        "mean1": 0.1 * jax.random.normal(ks[7], (H1,), jnp.float32),
        "var1": 0.5 + jax.random.uniform(ks[8], (H1,), jnp.float32),
        # BatchNorm1d(128)
        "g2": 1.0 + 0.1 * jax.random.normal(ks[9], (H2,), jnp.float32),
        "beta2": 0.1 * jax.random.normal(ks[10], (H2,), jnp.float32),
        "mean2": 0.1 * jax.random.normal(ks[11], (H2,), jnp.float32),
        "var2": 0.5 + jax.random.uniform(ks[12], (H2,), jnp.float32),
    }

    # One-time setup: weight fake-quant, BN + quant-scale folding, calibration.
    prep = prepare_params(params, x)
    prep = jax.tree_util.tree_map(jax.block_until_ready, prep)

    # Small single-block case.
    out = quant_mlp_forward(x, prep, num_classes=C)
    out = jax.block_until_ready(out)
    ref = _reference(x, prep, C)
    assert out.shape == (B, C)
    err = jnp.max(jnp.abs(out - ref))
    assert jnp.allclose(out, ref, atol=1e-4, rtol=1e-4), f"max abs err {err}"

    # Multi-step grid with a ragged final batch tile (no wrapper-side padding).
    B2 = 20
    x2 = jax.random.normal(ks[13], (B2, D_in), jnp.float32)
    out2 = jax.block_until_ready(quant_mlp_forward(x2, prep, num_classes=C))
    ref2 = _reference(x2, prep, C)
    assert out2.shape == (B2, C)
    err2 = jnp.max(jnp.abs(out2 - ref2))
    assert jnp.allclose(out2, ref2, atol=1e-4, rtol=1e-4), f"max abs err {err2}"

    print("KERNEL_OK")
</pallas_src>

<mosaic_0001>
module attributes {stable_mosaic.version = 11 : i64} {
  func.func @mlp_kernel(%arg0: i32, %arg1: memref<6xf32, #tpu.memory_space<smem>>, %arg2: memref<8x32xf32, #tpu.memory_space<vmem>>, %arg3: memref<32x256xbf16, #tpu.memory_space<vmem>>, %arg4: memref<256x128xbf16, #tpu.memory_space<vmem>>, %arg5: memref<128x128xbf16, #tpu.memory_space<vmem>>, %arg6: memref<1x896xf32, #tpu.memory_space<vmem>>, %arg7: memref<8x128xf32, #tpu.memory_space<vmem>>) attributes {dimension_semantics = [#tpu.dimension_semantics<parallel>], iteration_bounds = array<i64: 1>, scalar_prefetch = 0 : i64, scratch_operands = 0 : i64, tpu.core_type = #tpu.core_type<tc>, window_params = [{transform_indices = @transform_0, window_bounds = array<i64: 6>}, {transform_indices = @transform_1, window_bounds = array<i64: 8, 32>}, {pipeline_mode = #tpu.pipeline_mode<synchronous>, transform_indices = @transform_2, window_bounds = array<i64: 32, 256>}, {pipeline_mode = #tpu.pipeline_mode<synchronous>, transform_indices = @transform_3, window_bounds = array<i64: 256, 128>}, {pipeline_mode = #tpu.pipeline_mode<synchronous>, transform_indices = @transform_4, window_bounds = array<i64: 128, 128>}, {pipeline_mode = #tpu.pipeline_mode<synchronous>, transform_indices = @transform_5, window_bounds = array<i64: 1, 896>}, {transform_indices = @transform_6, window_bounds = array<i64: 8, 128>}]} {
    %c0 = arith.constant 0 : index
    %0 = memref.load %arg1[%c0] : memref<6xf32, #tpu.memory_space<smem>>
    %c1 = arith.constant 1 : index
    %1 = memref.load %arg1[%c1] : memref<6xf32, #tpu.memory_space<smem>>
    %c2 = arith.constant 2 : index
    %2 = memref.load %arg1[%c2] : memref<6xf32, #tpu.memory_space<smem>>
    %c3 = arith.constant 3 : index
    %3 = memref.load %arg1[%c3] : memref<6xf32, #tpu.memory_space<smem>>
    %c4 = arith.constant 4 : index
    %4 = memref.load %arg1[%c4] : memref<6xf32, #tpu.memory_space<smem>>
    %c5 = arith.constant 5 : index
    %5 = memref.load %arg1[%c5] : memref<6xf32, #tpu.memory_space<smem>>
    %c0_0 = arith.constant 0 : index
    %c0_1 = arith.constant 0 : index
    %6 = vector.load %arg6[%c0_0, %c0_1] : memref<1x896xf32, #tpu.memory_space<vmem>>, vector<1x256xf32>
    %c0_2 = arith.constant 0 : index
    %c256 = arith.constant 256 : index
    %7 = vector.load %arg6[%c0_2, %c256] : memref<1x896xf32, #tpu.memory_space<vmem>>, vector<1x256xf32>
    %c0_3 = arith.constant 0 : index
    %c512 = arith.constant 512 : index
    %8 = vector.load %arg6[%c0_3, %c512] : memref<1x896xf32, #tpu.memory_space<vmem>>, vector<1x128xf32>
    %c0_4 = arith.constant 0 : index
    %c640 = arith.constant 640 : index
    %9 = vector.load %arg6[%c0_4, %c640] : memref<1x896xf32, #tpu.memory_space<vmem>>, vector<1x128xf32>
    %c0_5 = arith.constant 0 : index
    %c768 = arith.constant 768 : index
    %10 = vector.load %arg6[%c0_5, %c768] : memref<1x896xf32, #tpu.memory_space<vmem>>, vector<1x128xf32>
    %c0_6 = arith.constant 0 : index
    %c0_7 = arith.constant 0 : index
    %11 = vector.load %arg2[%c0_6, %c0_7] : memref<8x32xf32, #tpu.memory_space<vmem>>, vector<8x32xf32>
    %12 = vector.broadcast %0 : f32 to vector<8x32xf32>
    %13 = arith.mulf %11, %12 : vector<8x32xf32>
    %14 = math.roundeven %13 : vector<8x32xf32>
    %cst = arith.constant -3.200000e+01 : f32
    %cst_8 = arith.constant 3.100000e+01 : f32
    %15 = vector.broadcast %cst : f32 to vector<8x32xf32>
    %16 = arith.maximumf %15, %14 : vector<8x32xf32>
    %17 = vector.broadcast %cst_8 : f32 to vector<8x32xf32>
    %18 = arith.minimumf %17, %16 : vector<8x32xf32>
    %19 = arith.truncf %18 : vector<8x32xf32> to vector<8x32xbf16>
    %c0_9 = arith.constant 0 : index
    %c0_10 = arith.constant 0 : index
    %20 = vector.load %arg3[%c0_9, %c0_10] : memref<32x256xbf16, #tpu.memory_space<vmem>>, vector<32x256xbf16>
    %cst_11 = arith.constant dense<0.000000e+00> : vector<8x256xf32>
    %21 = tpu.matmul %19, %20, %cst_11 {dimension_numbers = #tpu.dot_dimension_numbers<[1], [0], [0], [1], [0, 0, 1, 1], [], []>} : vector<8x32xbf16>, vector<32x256xbf16>, vector<8x256xf32> -> vector<8x256xf32>
    %22 = vector.broadcast %6 : vector<1x256xf32> to vector<8x256xf32>
    %23 = arith.mulf %21, %22 : vector<8x256xf32>
    %24 = vector.broadcast %7 : vector<1x256xf32> to vector<8x256xf32>
    %25 = arith.addf %23, %24 : vector<8x256xf32>
    %26 = math.roundeven %25 : vector<8x256xf32>
    %cst_12 = arith.constant -3.200000e+01 : f32
    %cst_13 = arith.constant 3.100000e+01 : f32
    %27 = vector.broadcast %cst_12 : f32 to vector<8x256xf32>
    %28 = arith.maximumf %27, %26 : vector<8x256xf32>
    %29 = vector.broadcast %cst_13 : f32 to vector<8x256xf32>
    %30 = arith.minimumf %29, %28 : vector<8x256xf32>
    %31 = vector.broadcast %2 : f32 to vector<8x256xf32>
    %32 = arith.mulf %31, %30 : vector<8x256xf32>
    %33 = vector.broadcast %1 : f32 to vector<8x256xf32>
    %34 = arith.addf %33, %32 : vector<8x256xf32>
    %35 = arith.mulf %30, %34 : vector<8x256xf32>
    %36 = math.roundeven %35 : vector<8x256xf32>
    %cst_14 = arith.constant -3.200000e+01 : f32
    %cst_15 = arith.constant 3.100000e+01 : f32
    %37 = vector.broadcast %cst_14 : f32 to vector<8x256xf32>
    %38 = arith.maximumf %37, %36 : vector<8x256xf32>
    %39 = vector.broadcast %cst_15 : f32 to vector<8x256xf32>
    %40 = arith.minimumf %39, %38 : vector<8x256xf32>
    %41 = arith.truncf %40 : vector<8x256xf32> to vector<8x256xbf16>
    %c0_16 = arith.constant 0 : index
    %c0_17 = arith.constant 0 : index
    %42 = vector.load %arg4[%c0_16, %c0_17] : memref<256x128xbf16, #tpu.memory_space<vmem>>, vector<256x128xbf16>
    %cst_18 = arith.constant dense<0.000000e+00> : vector<8x128xf32>
    %43 = tpu.matmul %41, %42, %cst_18 {dimension_numbers = #tpu.dot_dimension_numbers<[1], [0], [0], [1], [0, 0, 1, 1], [], []>} : vector<8x256xbf16>, vector<256x128xbf16>, vector<8x128xf32> -> vector<8x128xf32>
    %44 = vector.broadcast %8 : vector<1x128xf32> to vector<8x128xf32>
    %45 = arith.mulf %43, %44 : vector<8x128xf32>
    %46 = vector.broadcast %9 : vector<1x128xf32> to vector<8x128xf32>
    %47 = arith.addf %45, %46 : vector<8x128xf32>
    %48 = math.roundeven %47 : vector<8x128xf32>
    %cst_19 = arith.constant -3.200000e+01 : f32
    %cst_20 = arith.constant 3.100000e+01 : f32
    %49 = vector.broadcast %cst_19 : f32 to vector<8x128xf32>
    %50 = arith.maximumf %49, %48 : vector<8x128xf32>
    %51 = vector.broadcast %cst_20 : f32 to vector<8x128xf32>
    %52 = arith.minimumf %51, %50 : vector<8x128xf32>
    %53 = vector.broadcast %4 : f32 to vector<8x128xf32>
    %54 = arith.mulf %53, %52 : vector<8x128xf32>
    %55 = vector.broadcast %3 : f32 to vector<8x128xf32>
    %56 = arith.addf %55, %54 : vector<8x128xf32>
    %57 = arith.mulf %52, %56 : vector<8x128xf32>
    %58 = math.roundeven %57 : vector<8x128xf32>
    %cst_21 = arith.constant -3.200000e+01 : f32
    %cst_22 = arith.constant 3.100000e+01 : f32
    %59 = vector.broadcast %cst_21 : f32 to vector<8x128xf32>
    %60 = arith.maximumf %59, %58 : vector<8x128xf32>
    %61 = vector.broadcast %cst_22 : f32 to vector<8x128xf32>
    %62 = arith.minimumf %61, %60 : vector<8x128xf32>
    %63 = arith.truncf %62 : vector<8x128xf32> to vector<8x128xbf16>
    %c0_23 = arith.constant 0 : index
    %c0_24 = arith.constant 0 : index
    %64 = vector.load %arg5[%c0_23, %c0_24] : memref<128x128xbf16, #tpu.memory_space<vmem>>, vector<128x128xbf16>
    %cst_25 = arith.constant dense<0.000000e+00> : vector<8x128xf32>
    %65 = tpu.matmul %63, %64, %cst_25 {dimension_numbers = #tpu.dot_dimension_numbers<[1], [0], [0], [1], [0, 0, 1, 1], [], []>} : vector<8x128xbf16>, vector<128x128xbf16>, vector<8x128xf32> -> vector<8x128xf32>
    %66 = vector.broadcast %5 : f32 to vector<8x128xf32>
    %67 = arith.mulf %65, %66 : vector<8x128xf32>
    %68 = vector.broadcast %10 : vector<1x128xf32> to vector<8x128xf32>
    %69 = arith.addf %67, %68 : vector<8x128xf32>
    %c0_26 = arith.constant 0 : index
    %c0_27 = arith.constant 0 : index
    %70 = vector.load %arg7[%c0_26, %c0_27] : memref<8x128xf32, #tpu.memory_space<vmem>>, vector<8x128xf32>
    tpu.vector_store %arg7[%c0_26, %c0_27], %69 {strides = array<i32>} : memref<8x128xf32, #tpu.memory_space<vmem>>, vector<8x128xf32>,
    return
  }
  func.func @transform_0(%arg0: i32) -> i32 {
    %c0_i32 = arith.constant 0 : i32
    %c0_i32_0 = arith.constant 0 : i32
    return %c0_i32 : i32
  }
  func.func @transform_1(%arg0: i32) -> (i32, i32) {
    %c0_i32 = arith.constant 0 : i32
    %c0_i32_0 = arith.constant 0 : i32
    return %arg0, %c0_i32 : i32, i32
  }
  func.func @transform_2(%arg0: i32) -> (i32, i32) {
    %c0_i32 = arith.constant 0 : i32
    %c0_i32_0 = arith.constant 0 : i32
    %c0_i32_1 = arith.constant 0 : i32
    return %c0_i32, %c0_i32_0 : i32, i32
  }
  func.func @transform_3(%arg0: i32) -> (i32, i32) {
    %c0_i32 = arith.constant 0 : i32
    %c0_i32_0 = arith.constant 0 : i32
    %c0_i32_1 = arith.constant 0 : i32
    return %c0_i32, %c0_i32_0 : i32, i32
  }
  func.func @transform_4(%arg0: i32) -> (i32, i32) {
    %c0_i32 = arith.constant 0 : i32
    %c0_i32_0 = arith.constant 0 : i32
    %c0_i32_1 = arith.constant 0 : i32
    return %c0_i32, %c0_i32_0 : i32, i32
  }
  func.func @transform_5(%arg0: i32) -> (i32, i32) {
    %c0_i32 = arith.constant 0 : i32
    %c0_i32_0 = arith.constant 0 : i32
    %c0_i32_1 = arith.constant 0 : i32
    return %c0_i32, %c0_i32_0 : i32, i32
  }
  func.func @transform_6(%arg0: i32) -> (i32, i32) {
    %c0_i32 = arith.constant 0 : i32
    %c0_i32_0 = arith.constant 0 : i32
    return %arg0, %c0_i32 : i32, i32
  }
}

</mosaic_0001>

<llo_original>
// kernel: quant_mlp_forward.1
$region0: #{quant_mlp_forward.1}
  #allocation0 [shape = 'u32[]', space=smem, size = 0x4, offset = 0x4, fixed_abs, tag = 'smem constant byte address 0x4 - core index']
  #allocation1 [shape = 'u32[144,128]{1,0:T(1,128)}', space=vmem, size = 0x12000, scoped, tag = 'internal scratch']
  %s0 = inlined_call_operand.vmem [shape: f32[6], index: 0, kind: input, shape index: {}]
  %s1 = inlined_call_operand.hbm [shape: f32[8,32], index: 1, kind: input, shape index: {}]
  %s2 = inlined_call_operand.hbm [shape: bf16[32,256], index: 2, kind: input, shape index: {}]
  %s3 = inlined_call_operand.hbm [shape: bf16[256,128], index: 3, kind: input, shape index: {}]
  %s4 = inlined_call_operand.hbm [shape: bf16[128,128], index: 4, kind: input, shape index: {}]
  %s5 = inlined_call_operand.hbm [shape: f32[1,896], index: 5, kind: input, shape index: {}]
  %s6 = inlined_call_operand.hbm [shape: f32[8,128], index: 6, kind: output, shape index: {}]
  %s7 = sld [smem:[#allocation0]]
  $region58: #{quant_mlp_forward.1} parent=0
    _
  %s9 = ssub.s32 1, %s7
  %s10 = scalar_select 0, %s9, %s7
  $region1: #{quant_mlp_forward.1} parent=0
    #allocation2 [shape = 'u8[512]{0}', space=smem, size = 0x200, scoped, tag = 'input window, operand 0, single buffered']
    #allocation3 [shape = 's32[1]{0}', space=sflag, size = 0x4, scoped, tag = 'scoped memory for quant_mlp_forward.1']
    #allocation4 [shape = 's32[1]{0}', space=sflag, size = 0x4, scoped, tag = 'scoped memory for quant_mlp_forward.1']
    #allocation5 [shape = 's32[1]{0}', space=sflag, size = 0x4, scoped, tag = 'scoped memory for quant_mlp_forward.1']
    #allocation6 [shape = 'u8[4096]{0}', space=vmem, size = 0x1000, scoped, tag = 'input window, operand 1, single buffered']
    #allocation7 [shape = 'u8[16384]{0}', space=vmem, size = 0x4000, scoped, tag = 'input window, operand 2, single buffered']
    #allocation8 [shape = 's32[1]{0}', space=sflag, size = 0x4, scoped, tag = 'scoped memory for quant_mlp_forward.1']
    #allocation9 [shape = 'u8[65536]{0}', space=vmem, size = 0x10000, scoped, tag = 'input window, operand 3, single buffered']
    #allocation10 [shape = 'u8[32768]{0}', space=vmem, size = 0x8000, scoped, tag = 'input window, operand 4, single buffered']
    #allocation11 [shape = 's32[1]{0}', space=sflag, size = 0x4, scoped, tag = 'scoped memory for quant_mlp_forward.1']
    #allocation12 [shape = 'u8[3584]{0}', space=vmem, size = 0x1000, scoped, tag = 'input window, operand 5, single buffered']
    #allocation13 [shape = 'u8[4096]{0}', space=vmem, size = 0x1000, scoped, tag = 'output window, operand 0, single buffered']
    %11 = vsyncpa [#allocation5], 0
    %12 = vsyncpa [#allocation3], 0
    %13 = vsyncpa [#allocation8], 0
    %14 = vsyncpa [#allocation11], 0
    %15 = vsyncpa [#allocation4], 0
    // Predicated region
    $region2: #{quant_mlp_forward.1} parent=1 // pred_check
      _
    $region3: #{quant_mlp_forward.1} parent=1 // pred_check_branch
      %17 = sbr.rel (0) target = $region5
    $region4: #{quant_mlp_forward.1} parent=1 // pred_region
      %s19 = ssub.s32 16, 16
      %20 = vsyncadd [#allocation5], %s19
      %s22 = sshll.u32 %s0, 4
      %s23 = int_to_ptr.vmem [resolvable:$true] %s22
      %25 = dma.vmem_to_smem %s23, 16, [#allocation2], [#allocation5]
    $region5: #{quant_mlp_forward.1} parent=1 // pred_fallthru
      _
    // Predicated region
    $region6: #{quant_mlp_forward.1} parent=1 // pred_check
      _
    $region7: #{quant_mlp_forward.1} parent=1 // pred_check_branch
      %27 = sbr.rel (0) target = $region9
    $region8: #{quant_mlp_forward.1} parent=1 // pred_region
      %s29 = ssub.s32 128, 128
      %30 = vsyncadd [#allocation3], %s29
      %s32 = sshll.u32 [#allocation6], 4
      %s33 = int_to_ptr.vmem [resolvable:$true] %s32
      %35 = dma.hbm_to_vmem [thread:$0]  %s1, 128, %s33, [#allocation3]
    $region9: #{quant_mlp_forward.1} parent=1 // pred_fallthru
      _
    // Predicated region
    $region10: #{quant_mlp_forward.1} parent=1 // pred_check
      _
    $region11: #{quant_mlp_forward.1} parent=1 // pred_check_branch
      %37 = sbr.rel (0) target = $region13
    $region12: #{quant_mlp_forward.1} parent=1 // pred_region
      %s39 = ssub.s32 512, 512
      %40 = vsyncadd [#allocation8], %s39
      %s41 = sshll.u32 [#allocation7], 4
      %s42 = int_to_ptr.vmem [resolvable:$true] %s41
      %47 = dma.hbm_to_vmem [thread:$0]  %s2, 512, %s42, [#allocation8], 128, 128, 8
    $region13: #{quant_mlp_forward.1} parent=1 // pred_fallthru
      _
    // Predicated region
    $region14: #{quant_mlp_forward.1} parent=1 // pred_check
      _
    $region15: #{quant_mlp_forward.1} parent=1 // pred_check_branch
      %49 = sbr.rel (0) target = $region17
    $region16: #{quant_mlp_forward.1} parent=1 // pred_region
      %s51 = ssub.s32 2048, 2048
      %52 = vsyncadd [#allocation8], %s51
      %s53 = sshll.u32 [#allocation9], 4
      %s54 = int_to_ptr.vmem [resolvable:$true] %s53
      %59 = dma.hbm_to_vmem [thread:$0]  %s3, 2048, %s54, [#allocation8], 64, 64, 4
    $region17: #{quant_mlp_forward.1} parent=1 // pred_fallthru
      _
    // Predicated region
    $region18: #{quant_mlp_forward.1} parent=1 // pred_check
      _
    $region19: #{quant_mlp_forward.1} parent=1 // pred_check_branch
      %61 = sbr.rel (0) target = $region21
    $region20: #{quant_mlp_forward.1} parent=1 // pred_region
      %s63 = ssub.s32 1024, 1024
      %64 = vsyncadd [#allocation11], %s63
      %s65 = sshll.u32 [#allocation10], 4
      %s66 = int_to_ptr.vmem [resolvable:$true] %s65
      %71 = dma.hbm_to_vmem [thread:$0]  %s4, 1024, %s66, [#allocation11], 64, 64, 4
    $region21: #{quant_mlp_forward.1} parent=1 // pred_fallthru
      _
    // Predicated region
    $region22: #{quant_mlp_forward.1} parent=1 // pred_check
      _
    $region23: #{quant_mlp_forward.1} parent=1 // pred_check_branch
      %73 = sbr.rel (0) target = $region25
    $region24: #{quant_mlp_forward.1} parent=1 // pred_region
      %s75 = ssub.s32 112, 112
      %76 = vsyncadd [#allocation11], %s75
      %s78 = sshll.u32 [#allocation12], 4
      %s79 = int_to_ptr.vmem [resolvable:$true] %s78
      %81 = dma.hbm_to_vmem [thread:$0]  %s5, 112, %s79, [#allocation11]
    $region25: #{quant_mlp_forward.1} parent=1 // pred_fallthru
      _
    // Predicated region
    $region26: #{quant_mlp_forward.1} parent=1 // pred_check
      _
    $region27: #{quant_mlp_forward.1} parent=1 // pred_check_branch
      %83 = sbr.rel (0) target = $region29
    $region28: #{quant_mlp_forward.1} parent=1 // pred_region
      %84 = dma.done [#allocation5], 16
    $region29: #{quant_mlp_forward.1} parent=1 // pred_fallthru
      _
    // Predicated region
    $region30: #{quant_mlp_forward.1} parent=1 // pred_check
      _
    $region31: #{quant_mlp_forward.1} parent=1 // pred_check_branch
      %86 = sbr.rel (0) target = $region33
    $region32: #{quant_mlp_forward.1} parent=1 // pred_region
      %87 = dma.done [#allocation3], 128
    $region33: #{quant_mlp_forward.1} parent=1 // pred_fallthru
      _
    // Predicated region
    $region34: #{quant_mlp_forward.1} parent=1 // pred_check
      _
    $region35: #{quant_mlp_forward.1} parent=1 // pred_check_branch
      %89 = sbr.rel (0) target = $region37
    $region36: #{quant_mlp_forward.1} parent=1 // pred_region
      %90 = dma.done [#allocation8], 512
    $region37: #{quant_mlp_forward.1} parent=1 // pred_fallthru
      _
    // Predicated region
    $region38: #{quant_mlp_forward.1} parent=1 // pred_check
      _
    $region39: #{quant_mlp_forward.1} parent=1 // pred_check_branch
      %92 = sbr.rel (0) target = $region41
    $region40: #{quant_mlp_forward.1} parent=1 // pred_region
      %93 = dma.done [#allocation8], 2048
    $region41: #{quant_mlp_forward.1} parent=1 // pred_fallthru
      _
    // Predicated region
    $region42: #{quant_mlp_forward.1} parent=1 // pred_check
      _
    $region43: #{quant_mlp_forward.1} parent=1 // pred_check_branch
      %95 = sbr.rel (0) target = $region45
    $region44: #{quant_mlp_forward.1} parent=1 // pred_region
      %96 = dma.done [#allocation11], 1024
    $region45: #{quant_mlp_forward.1} parent=1 // pred_fallthru
      _
    // Predicated region
    $region46: #{quant_mlp_forward.1} parent=1 // pred_check
      _
    $region47: #{quant_mlp_forward.1} parent=1 // pred_check_branch
      %98 = sbr.rel (0) target = $region49
    $region48: #{quant_mlp_forward.1} parent=1 // pred_region
      %99 = dma.done [#allocation11], 112
    $region49: #{quant_mlp_forward.1} parent=1 // pred_fallthru
      _
    %100 = sfence
    %s102 = sld [smem:[#allocation2]]
    %s103 = sld [smem:[#allocation2 + $0x1]]
    %s104 = sld [smem:[#allocation2 + $0x2]]
    %s105 = sld [smem:[#allocation2 + $0x3]]
    %s106 = sld [smem:[#allocation2 + $0x4]]
    %s107 = sld [smem:[#allocation2 + $0x5]]
    %v108 = vld [vmem:[#allocation12] sm:$0x3]
    %v109 = vld [vmem:[#allocation12 + $0x2] sm:$0x3]
    %v110 = vld [vmem:[#allocation12 + $0x4] sm:$0x1]
    %v111 = vld [vmem:[#allocation12 + $0x5] sm:$0x1]
    %v112 = vld [vmem:[#allocation12 + $0x6] sm:$0x1]
    %v113 = vld [vmem:[#allocation6] sm:$0xff]
    %v114 = vstv %s102
    %v115 = vmul.f32 %v113, %v114
    %v116 = vround.ne.pseudo %v115
    %v117 = vmax.f32 %v116, -32.0
    %v118 = vmin.f32 %v117, 31.0
    %v119 = vpack.c.bf16 %v118, %v118
    %v120 = vld [vmem:[#allocation7] sm:$0xff]
    %v121 = vld [vmem:[#allocation7 + $0x8] sm:$0xff]
    %v122 = vld [vmem:[#allocation7 + $0x10] sm:$0xff]
    %v123 = vld [vmem:[#allocation7 + $0x18] sm:$0xff]
    %v128 = vunpack.c.l.b16 %v120
    %v129 = vunpack.c.h.b16 %v120
    %v130 = vunpack.c.l.b16 %v121
    %v131 = vunpack.c.h.b16 %v121
    %v132 = vunpack.c.l.b16 %v122
    %v133 = vunpack.c.h.b16 %v122
    %v134 = vunpack.c.l.b16 %v123
    %v135 = vunpack.c.h.b16 %v123
    %v136 = vpack.c.b16 %v130, %v128
    %v137 = vpack.c.b16 %v131, %v129
    %v138 = vpack.c.b16 %v134, %v132
    %v139 = vpack.c.b16 %v135, %v133
    %vm144 = vcmask 261120
    %v146 = vsel %vm144, %v119, 0
    %148 = vmatprep.subr.bf16.mxu0 %v137
    %149 = vmatpush1.bf16.msra.mxu0 %v136
    %150 = vmatprep.subr.bf16.mxu0 %v139
    %151 = vmatpush1.bf16.msra.mxu0 %v138
    %152 = vmatprep.subr.bf16.mxu0 0
    %153 = vmatpush1.bf16.msra.mxu0 0
    %154 = vmatprep.subr.bf16.mxu0 0
    %155 = vmatpush1.bf16.msra.mxu0 0
    %156 = vmatprep.subr.bf16.mxu0 0
    %157 = vmatpush1.bf16.msra.mxu0 0
    %158 = vmatprep.subr.bf16.mxu0 0
    %159 = vmatpush1.bf16.msra.mxu0 0
    %160 = vmatprep.subr.bf16.mxu0 0
    %161 = vmatpush1.bf16.msra.mxu0 0
    %162 = vmatprep.subr.bf16.mxu0 0
    %163 = vmatpush1.bf16.msra.mxu0 0
    %164 = vmatprep.subr.bf16.mxu0 0
    %165 = vmatpush1.bf16.msra.mxu0 0
    %166 = vmatprep.subr.bf16.mxu0 0
    %167 = vmatpush1.bf16.msra.mxu0 0
    %168 = vmatprep.subr.bf16.mxu0 0
    %169 = vmatpush1.bf16.msra.mxu0 0
    %170 = vmatprep.subr.bf16.mxu0 0
    %171 = vmatpush1.bf16.msra.mxu0 0
    %172 = vmatprep.subr.bf16.mxu0 0
    %173 = vmatpush1.bf16.msra.mxu0 0
    %174 = vmatprep.subr.bf16.mxu0 0
    %175 = vmatpush1.bf16.msra.mxu0 0
    %176 = vmatprep.subr.bf16.mxu0 0
    %177 = vmatpush1.bf16.msra.mxu0 0
    %178 = vmatprep.subr.bf16.mxu0 0
    %179 = vmatpush1.bf16.msra.mxu0 0
    %180 = vmatprep.mubr.bf16.mxu0 0
    %181 = vmatmul.mubr.bf16.gmra.mrb[0].mxu0 %v146
    %v182 = vpop.f32.mrb[0].mxu0
    %v183 = vadd.f32 0.0, %v182
    %v184 = vpop.f32.mrb[0].mxu0
    %v185 = vadd.f32 0.0, %v184
    %v186 = vpop.f32.mrb[0].mxu0
    %v187 = vpop.f32.mrb[0].mxu0
    %188 = vdwg.mxu0
    %v190 = vlaneseq
    %v191 = vshrl.u32 %v190, 7
    %v192 = vsub.s32 0, %v191
    %v193 = vrot.slane %v108, %v192
    %v194 = vlaneseq
    %v195 = vshrl.u32 %v194, 7
    %v196 = vsub.s32 1, %v195
    %v197 = vrot.slane %v108, %v196
    %v200 = vmul.f32 %v183, %v193
    %v201 = vmul.f32 %v185, %v197
    %v203 = vlaneseq
    %v204 = vshrl.u32 %v203, 7
    %v205 = vsub.s32 0, %v204
    %v206 = vrot.slane %v109, %v205
    %v207 = vlaneseq
    %v208 = vshrl.u32 %v207, 7
    %v209 = vsub.s32 1, %v208
    %v210 = vrot.slane %v109, %v209
    %v213 = vadd.f32 %v200, %v206
    %v214 = vadd.f32 %v201, %v210
    %v215 = vround.ne.pseudo %v213
    %v216 = vround.ne.pseudo %v214
    %v217 = vmax.f32 %v215, -32.0
    %v218 = vmax.f32 %v216, -32.0
    %v219 = vmin.f32 %v217, 31.0
    %v220 = vmin.f32 %v218, 31.0
    %v221 = vstv %s104
    %v222 = vmul.f32 %v221, %v219
    %v223 = vmul.f32 %v221, %v220
    %v224 = vstv %s103
    %v225 = vadd.f32 %v224, %v222
    %v226 = vadd.f32 %v224, %v223
    %v227 = vmul.f32 %v219, %v225
    %v228 = vmul.f32 %v220, %v226
    %v229 = vround.ne.pseudo %v227
    %v230 = vround.ne.pseudo %v228
    %v231 = vmax.f32 %v229, -32.0
    %v232 = vmax.f32 %v230, -32.0
    %v233 = vmin.f32 %v231, 31.0
    %v234 = vmin.f32 %v232, 31.0
    %v235 = vpack.c.bf16 %v233, %v233
    %v236 = vpack.c.bf16 %v234, %v234
    %v237 = vld [vmem:[#allocation9] sm:$0xf]
    %v238 = vld [vmem:[#allocation9 + $0x4] sm:$0xf]
    %v239 = vld [vmem:[#allocation9 + $0x8] sm:$0xf]
    %v240 = vld [vmem:[#allocation9 + $0xc] sm:$0xf]
    %v241 = vld [vmem:[#allocation9 + $0x10] sm:$0xf]
    %v242 = vld [vmem:[#allocation9 + $0x14] sm:$0xf]
    %v243 = vld [vmem:[#allocation9 + $0x18] sm:$0xf]
    %v244 = vld [vmem:[#allocation9 + $0x1c] sm:$0xf]
    %v245 = vld [vmem:[#allocation9 + $0x20] sm:$0xf]
    %v246 = vld [vmem:[#allocation9 + $0x24] sm:$0xf]
    %v247 = vld [vmem:[#allocation9 + $0x28] sm:$0xf]
    %v248 = vld [vmem:[#allocation9 + $0x2c] sm:$0xf]
    %v249 = vld [vmem:[#allocation9 + $0x30] sm:$0xf]
    %v250 = vld [vmem:[#allocation9 + $0x34] sm:$0xf]
    %v251 = vld [vmem:[#allocation9 + $0x38] sm:$0xf]
    %v252 = vld [vmem:[#allocation9 + $0x3c] sm:$0xf]
    %v253 = vld [vmem:[#allocation9 + $0x40] sm:$0xf]
    %v254 = vld [vmem:[#allocation9 + $0x44] sm:$0xf]
    %v255 = vld [vmem:[#allocation9 + $0x48] sm:$0xf]
    %v256 = vld [vmem:[#allocation9 + $0x4c] sm:$0xf]
    %v257 = vld [vmem:[#allocation9 + $0x50] sm:$0xf]
    %v258 = vld [vmem:[#allocation9 + $0x54] sm:$0xf]
    %v259 = vld [vmem:[#allocation9 + $0x58] sm:$0xf]
    %v260 = vld [vmem:[#allocation9 + $0x5c] sm:$0xf]
    %v261 = vld [vmem:[#allocation9 + $0x60] sm:$0xf]
    %v262 = vld [vmem:[#allocation9 + $0x64] sm:$0xf]
    %v263 = vld [vmem:[#allocation9 + $0x68] sm:$0xf]
    %v264 = vld [vmem:[#allocation9 + $0x6c] sm:$0xf]
    %v265 = vld [vmem:[#allocation9 + $0x70] sm:$0xf]
    %v266 = vld [vmem:[#allocation9 + $0x74] sm:$0xf]
    %v267 = vld [vmem:[#allocation9 + $0x78] sm:$0xf]
    %v268 = vld [vmem:[#allocation9 + $0x7c] sm:$0xf]
    %v301 = vunpack.c.l.b16 %v237
    %v302 = vunpack.c.l.b16 %v238
    %v303 = vunpack.c.l.b16 %v239
    %v304 = vunpack.c.l.b16 %v240
    %v305 = vunpack.c.l.b16 %v241
    %v306 = vunpack.c.l.b16 %v242
    %v307 = vunpack.c.l.b16 %v243
    %v308 = vunpack.c.l.b16 %v244
    %v309 = vunpack.c.l.b16 %v245
    %v310 = vunpack.c.l.b16 %v246
    %v311 = vunpack.c.l.b16 %v247
    %v312 = vunpack.c.l.b16 %v248
    %v313 = vunpack.c.l.b16 %v249
    %v314 = vunpack.c.l.b16 %v250
    %v315 = vunpack.c.l.b16 %v251
    %v316 = vunpack.c.l.b16 %v252
    %v317 = vunpack.c.l.b16 %v253
    %v318 = vunpack.c.l.b16 %v254
    %v319 = vunpack.c.l.b16 %v255
    %v320 = vunpack.c.l.b16 %v256
    %v321 = vunpack.c.l.b16 %v257
    %v322 = vunpack.c.l.b16 %v258
    %v323 = vunpack.c.l.b16 %v259
    %v324 = vunpack.c.l.b16 %v260
    %v325 = vunpack.c.l.b16 %v261
    %v326 = vunpack.c.l.b16 %v262
    %v327 = vunpack.c.l.b16 %v263
    %v328 = vunpack.c.l.b16 %v264
    %v329 = vunpack.c.l.b16 %v265
    %v330 = vunpack.c.l.b16 %v266
    %v331 = vunpack.c.l.b16 %v267
    %v332 = vunpack.c.l.b16 %v268
    %v333 = vpack.c.b16 %v302, %v301
    %v334 = vpack.c.b16 %v304, %v303
    %v335 = vpack.c.b16 %v306, %v305
    %v336 = vpack.c.b16 %v308, %v307
    %v337 = vpack.c.b16 %v310, %v309
    %v338 = vpack.c.b16 %v312, %v311
    %v339 = vpack.c.b16 %v314, %v313
    %v340 = vpack.c.b16 %v316, %v315
    %v341 = vpack.c.b16 %v318, %v317
    %v342 = vpack.c.b16 %v320, %v319
    %v343 = vpack.c.b16 %v322, %v321
    %v344 = vpack.c.b16 %v324, %v323
    %v345 = vpack.c.b16 %v326, %v325
    %v346 = vpack.c.b16 %v328, %v327
    %v347 = vpack.c.b16 %v330, %v329
    %v348 = vpack.c.b16 %v332, %v331
    %365 = vmatprep.subr.bf16.mxu0 0
    %366 = vmatpush1.bf16.msra.mxu0 %v333
    %367 = vmatprep.subr.bf16.mxu0 0
    %368 = vmatpush1.bf16.msra.mxu0 %v334
    %369 = vmatprep.subr.bf16.mxu0 0
    %370 = vmatpush1.bf16.msra.mxu0 %v335
    %371 = vmatprep.subr.bf16.mxu0 0
    %372 = vmatpush1.bf16.msra.mxu0 %v336
    %373 = vmatprep.subr.bf16.mxu0 0
    %374 = vmatpush1.bf16.msra.mxu0 %v337
    %375 = vmatprep.subr.bf16.mxu0 0
    %376 = vmatpush1.bf16.msra.mxu0 %v338
    %377 = vmatprep.subr.bf16.mxu0 0
    %378 = vmatpush1.bf16.msra.mxu0 %v339
    %379 = vmatprep.subr.bf16.mxu0 0
    %380 = vmatpush1.bf16.msra.mxu0 %v340
    %381 = vmatprep.subr.bf16.mxu0 0
    %382 = vmatpush1.bf16.msra.mxu0 %v341
    %383 = vmatprep.subr.bf16.mxu0 0
    %384 = vmatpush1.bf16.msra.mxu0 %v342
    %385 = vmatprep.subr.bf16.mxu0 0
    %386 = vmatpush1.bf16.msra.mxu0 %v343
    %387 = vmatprep.subr.bf16.mxu0 0
    %388 = vmatpush1.bf16.msra.mxu0 %v344
    %389 = vmatprep.subr.bf16.mxu0 0
    %390 = vmatpush1.bf16.msra.mxu0 %v345
    %391 = vmatprep.subr.bf16.mxu0 0
    %392 = vmatpush1.bf16.msra.mxu0 %v346
    %393 = vmatprep.subr.bf16.mxu0 0
    %394 = vmatpush1.bf16.msra.mxu0 %v347
    %395 = vmatprep.subr.bf16.mxu0 0
    %396 = vmatpush1.bf16.msra.mxu0 %v348
    %397 = vmatprep.mubr.bf16.mxu0 %v236
    %398 = vmatmul.mubr.bf16.gmra.mrb[0].mxu0 %v235
    %v399 = vpop.f32.mrb[0].mxu0
    %v400 = vadd.f32 0.0, %v399
    %v401 = vpop.f32.mrb[0].mxu0
    %v402 = vpop.f32.mrb[0].mxu0
    %v403 = vpop.f32.mrb[0].mxu0
    %404 = vdwg.mxu0
    %v406 = vlaneseq
    %v407 = vshrl.u32 %v406, 7
    %v408 = vsub.s32 0, %v407
    %v409 = vrot.slane %v110, %v408
    %v411 = vmul.f32 %v400, %v409
    %v413 = vlaneseq
    %v414 = vshrl.u32 %v413, 7
    %v415 = vsub.s32 0, %v414
    %v416 = vrot.slane %v111, %v415
    %v418 = vadd.f32 %v411, %v416
    %v419 = vround.ne.pseudo %v418
    %v420 = vmax.f32 %v419, -32.0
    %v421 = vmin.f32 %v420, 31.0
    %v422 = vstv %s106
    %v423 = vmul.f32 %v422, %v421
    %v424 = vstv %s105
    %v425 = vadd.f32 %v424, %v423
    %v426 = vmul.f32 %v421, %v425
    %v427 = vround.ne.pseudo %v426
    %v428 = vmax.f32 %v427, -32.0
    %v429 = vmin.f32 %v428, 31.0
    %v430 = vpack.c.bf16 %v429, %v429
    %v431 = vld [vmem:[#allocation10] sm:$0xf]
    %v432 = vld [vmem:[#allocation10 + $0x4] sm:$0xf]
    %v433 = vld [vmem:[#allocation10 + $0x8] sm:$0xf]
    %v434 = vld [vmem:[#allocation10 + $0xc] sm:$0xf]
    %v435 = vld [vmem:[#allocation10 + $0x10] sm:$0xf]
    %v436 = vld [vmem:[#allocation10 + $0x14] sm:$0xf]
    %v437 = vld [vmem:[#allocation10 + $0x18] sm:$0xf]
    %v438 = vld [vmem:[#allocation10 + $0x1c] sm:$0xf]
    %v439 = vld [vmem:[#allocation10 + $0x20] sm:$0xf]
    %v440 = vld [vmem:[#allocation10 + $0x24] sm:$0xf]
    %v441 = vld [vmem:[#allocation10 + $0x28] sm:$0xf]
    %v442 = vld [vmem:[#allocation10 + $0x2c] sm:$0xf]
    %v443 = vld [vmem:[#allocation10 + $0x30] sm:$0xf]
    %v444 = vld [vmem:[#allocation10 + $0x34] sm:$0xf]
    %v445 = vld [vmem:[#allocation10 + $0x38] sm:$0xf]
    %v446 = vld [vmem:[#allocation10 + $0x3c] sm:$0xf]
    %v463 = vunpack.c.l.b16 %v431
    %v464 = vunpack.c.l.b16 %v432
    %v465 = vunpack.c.l.b16 %v433
    %v466 = vunpack.c.l.b16 %v434
    %v467 = vunpack.c.l.b16 %v435
    %v468 = vunpack.c.l.b16 %v436
    %v469 = vunpack.c.l.b16 %v437
    %v470 = vunpack.c.l.b16 %v438
    %v471 = vunpack.c.l.b16 %v439
    %v472 = vunpack.c.l.b16 %v440
    %v473 = vunpack.c.l.b16 %v441
    %v474 = vunpack.c.l.b16 %v442
    %v475 = vunpack.c.l.b16 %v443
    %v476 = vunpack.c.l.b16 %v444
    %v477 = vunpack.c.l.b16 %v445
    %v478 = vunpack.c.l.b16 %v446
    %v479 = vpack.c.b16 %v464, %v463
    %v480 = vpack.c.b16 %v466, %v465
    %v481 = vpack.c.b16 %v468, %v467
    %v482 = vpack.c.b16 %v470, %v469
    %v483 = vpack.c.b16 %v472, %v471
    %v484 = vpack.c.b16 %v474, %v473
    %v485 = vpack.c.b16 %v476, %v475
    %v486 = vpack.c.b16 %v478, %v477
    %495 = vmatprep.subr.bf16.mxu0 0
    %496 = vmatpush1.bf16.msra.mxu0 %v479
    %497 = vmatprep.subr.bf16.mxu0 0
    %498 = vmatpush1.bf16.msra.mxu0 %v480
    %499 = vmatprep.subr.bf16.mxu0 0
    %500 = vmatpush1.bf16.msra.mxu0 %v481
    %501 = vmatprep.subr.bf16.mxu0 0
    %502 = vmatpush1.bf16.msra.mxu0 %v482
    %503 = vmatprep.subr.bf16.mxu0 0
    %504 = vmatpush1.bf16.msra.mxu0 %v483
    %505 = vmatprep.subr.bf16.mxu0 0
    %506 = vmatpush1.bf16.msra.mxu0 %v484
    %507 = vmatprep.subr.bf16.mxu0 0
    %508 = vmatpush1.bf16.msra.mxu0 %v485
    %509 = vmatprep.subr.bf16.mxu0 0
    %510 = vmatpush1.bf16.msra.mxu0 %v486
    %511 = vmatprep.subr.bf16.mxu0 0
    %512 = vmatpush1.bf16.msra.mxu0 0
    %513 = vmatprep.subr.bf16.mxu0 0
    %514 = vmatpush1.bf16.msra.mxu0 0
    %515 = vmatprep.subr.bf16.mxu0 0
    %516 = vmatpush1.bf16.msra.mxu0 0
    %517 = vmatprep.subr.bf16.mxu0 0
    %518 = vmatpush1.bf16.msra.mxu0 0
    %519 = vmatprep.subr.bf16.mxu0 0
    %520 = vmatpush1.bf16.msra.mxu0 0
    %521 = vmatprep.subr.bf16.mxu0 0
    %522 = vmatpush1.bf16.msra.mxu0 0
    %523 = vmatprep.subr.bf16.mxu0 0
    %524 = vmatpush1.bf16.msra.mxu0 0
    %525 = vmatprep.subr.bf16.mxu0 0
    %526 = vmatpush1.bf16.msra.mxu0 0
    %527 = vmatprep.mubr.bf16.mxu0 0
    %528 = vmatmul.mubr.bf16.gmra.mrb[0].mxu0 %v430
    %v529 = vpop.f32.mrb[0].mxu0
    %v530 = vadd.f32 0.0, %v529
    %v531 = vpop.f32.mrb[0].mxu0
    %v532 = vpop.f32.mrb[0].mxu0
    %v533 = vpop.f32.mrb[0].mxu0
    %534 = vdwg.mxu0
    %v535 = vstv %s107
    %v536 = vmul.f32 %v530, %v535
    %v538 = vlaneseq
    %v539 = vshrl.u32 %v538, 7
    %v540 = vsub.s32 0, %v539
    %v541 = vrot.slane %v112, %v540
    %v543 = vadd.f32 %v536, %v541
    %544 = vst [vmem:[#allocation13] sm:$0xff] %v543
    // Predicated region
    $region50: #{quant_mlp_forward.1} parent=1 // pred_check
      _
    $region51: #{quant_mlp_forward.1} parent=1 // pred_check_branch
      %546 = sbr.rel (0) target = $region53
    $region52: #{quant_mlp_forward.1} parent=1 // pred_region
      %s548 = ssub.s32 128, 128
      %549 = vsyncadd [#allocation4], %s548
      %s551 = sshll.u32 [#allocation13], 4
      %s552 = int_to_ptr.vmem [resolvable:$true] %s551
      %554 = dma.vmem_to_hbm [thread:$0]  %s552, 128, %s6, [#allocation4]
    $region53: #{quant_mlp_forward.1} parent=1 // pred_fallthru
      _
    // Predicated region
    $region54: #{quant_mlp_forward.1} parent=1 // pred_check
      _
    $region55: #{quant_mlp_forward.1} parent=1 // pred_check_branch
      %556 = sbr.rel (0) target = $region57
    $region56: #{quant_mlp_forward.1} parent=1 // pred_region
      %557 = dma.done [#allocation4], 128
    $region57: #{quant_mlp_forward.1} parent=1 // pred_fallthru
      _
    %558 = vsyncpa [#allocation3], 1
    %559 = vsyncpa [#allocation8], 1
    %560 = vsyncpa [#allocation11], 1
    %561 = vsyncpa [#allocation4], 1
    %562 = vsyncpa [#allocation5], 1

</llo_original>
